<compile_context>
chip_gen: v7x
topology: tpu7x:2x2x1
jax: 0.10.0
libtpu: 0.0.40
codegen_flags: <defaults>
</compile_context>

<pallas_src>
import jax
import jax.numpy as jnp
from jax.experimental import pallas as pl
from jax.experimental.pallas import tpu as pltpu

H = 10000            # true hidden width from the PyTorch module
HP = 10240           # padded hidden width (80 * 128, lane aligned)


def _mlp_kernel(x_ref, w1_ref, b1_ref, w2_ref, b2_ref, out_ref):
    # fc1: (B,1) * (1,HP) + (1,HP) -> (B,HP), ReLU — all on the VPU.
    h = jnp.maximum(x_ref[...] * w1_ref[...] + b1_ref[...], 0.0)
    # fc2: VPU multiply against the lane-dense w2 row + XLU lane reduction.
    # Padded lanes of w2 are zero, so they contribute nothing to the sum.
    out_ref[...] = (
        jnp.sum(h * w2_ref[...], axis=-1, keepdims=True) + b2_ref[...]
    ).astype(out_ref.dtype)


@jax.jit
def simple_nn_forward(x, w1, b1, w2_row, b2):
    """x: (B, 1) f32. Parameters already padded to HP along the hidden axis."""
    B = x.shape[0]
    vmem_spec = pl.BlockSpec(memory_space=pltpu.MemorySpace.VMEM)
    return pl.pallas_call(
        _mlp_kernel,
        out_shape=jax.ShapeDtypeStruct((B, 1), jnp.float32),
        in_specs=[vmem_spec, vmem_spec, vmem_spec, vmem_spec, vmem_spec],
        out_specs=vmem_spec,
    )(x, w1, b1, w2_row, b2)


def init_params(key):
    """Deterministic PyTorch-style Linear init: U(-1/sqrt(fan_in), 1/sqrt(fan_in))."""
    k1, k2, k3, k4 = jax.random.split(key, 4)
    # fc1: Linear(1, 10000): weight (10000, 1), bias (10000,), fan_in = 1
    bound1 = 1.0
    w1 = jax.random.uniform(k1, (H, 1), jnp.float32, -bound1, bound1)
    b1 = jax.random.uniform(k2, (H,), jnp.float32, -bound1, bound1)
    # fc2: Linear(10000, 1): weight (1, 10000), bias (1,), fan_in = 10000
    bound2 = 1.0 / jnp.sqrt(jnp.float32(H))
    w2 = jax.random.uniform(k3, (1, H), jnp.float32, -bound2, bound2)
    b2 = jax.random.uniform(k4, (1,), jnp.float32, -bound2, bound2)

    # Kernel layout: lane-dense rows, zero-padded along the hidden axis to HP.
    w1_t = jnp.zeros((1, HP), jnp.float32).at[:, :H].set(w1.T)          # (1, HP)
    b1_p = jnp.zeros((1, HP), jnp.float32).at[:, :H].set(b1[None, :])   # (1, HP)
    w2_r = jnp.zeros((1, HP), jnp.float32).at[:, :H].set(w2)            # (1, HP)  lane-dense row
    b2_p = b2.reshape(1, 1)                                             # (1, 1)
    return w1_t, b1_p, w2_r, b2_p


def reference_forward(x, w1, b1, w2_row, b2):
    h = jnp.maximum(x @ w1 + b1, 0.0)          # (B, HP)
    return h @ w2_row.T + b2                    # (B, 1)


if __name__ == "__main__":
    key = jax.random.PRNGKey(0)
    kx, kp = jax.random.split(key)

    B = 8
    x = jax.random.uniform(kx, (B, 1), jnp.float32, 0.0, 100.0)  # e.g. pixel counts

    w1, b1, w2_row, b2 = init_params(kp)

    out = simple_nn_forward(x, w1, b1, w2_row, b2)
    out = jax.block_until_ready(out)

    ref = reference_forward(x, w1, b1, w2_row, b2)
    assert out.shape == (B, 1)
    assert jnp.allclose(out, ref, rtol=1e-4, atol=1e-3), (out, ref)

    print("KERNEL_OK")
</pallas_src>

<mosaic_0001>
module attributes {stable_mosaic.version = 11 : i64} {
  func.func @_mlp_kernel(%arg0: memref<8x1xf32, #tpu.memory_space<vmem>>, %arg1: memref<1x10240xf32, #tpu.memory_space<vmem>>, %arg2: memref<1x10240xf32, #tpu.memory_space<vmem>>, %arg3: memref<1x10240xf32, #tpu.memory_space<vmem>>, %arg4: memref<1x1xf32, #tpu.memory_space<vmem>>, %arg5: memref<8x1xf32, #tpu.memory_space<vmem>>) attributes {dimension_semantics = [], scalar_prefetch = 0 : i64, scratch_operands = 0 : i64, tpu.core_type = #tpu.core_type<tc>} {
    %c0 = arith.constant 0 : index
    %c0_0 = arith.constant 0 : index
    %0 = vector.load %arg0[%c0, %c0_0] : memref<8x1xf32, #tpu.memory_space<vmem>>, vector<8x1xf32>
    %c0_1 = arith.constant 0 : index
    %c0_2 = arith.constant 0 : index
    %1 = vector.load %arg1[%c0_1, %c0_2] : memref<1x10240xf32, #tpu.memory_space<vmem>>, vector<1x10240xf32>
    %2 = vector.broadcast %0 : vector<8x1xf32> to vector<8x10240xf32>
    %3 = vector.broadcast %1 : vector<1x10240xf32> to vector<8x10240xf32>
    %4 = arith.mulf %2, %3 : vector<8x10240xf32>
    %c0_3 = arith.constant 0 : index
    %c0_4 = arith.constant 0 : index
    %5 = vector.load %arg2[%c0_3, %c0_4] : memref<1x10240xf32, #tpu.memory_space<vmem>>, vector<1x10240xf32>
    %6 = vector.broadcast %5 : vector<1x10240xf32> to vector<8x10240xf32>
    %7 = arith.addf %4, %6 : vector<8x10240xf32>
    %cst = arith.constant 0.000000e+00 : f32
    %8 = vector.broadcast %cst : f32 to vector<8x10240xf32>
    %9 = arith.maximumf %7, %8 : vector<8x10240xf32>
    %c0_5 = arith.constant 0 : index
    %c0_6 = arith.constant 0 : index
    %10 = vector.load %arg3[%c0_5, %c0_6] : memref<1x10240xf32, #tpu.memory_space<vmem>>, vector<1x10240xf32>
    %11 = vector.broadcast %10 : vector<1x10240xf32> to vector<8x10240xf32>
    %12 = arith.mulf %9, %11 : vector<8x10240xf32>
    %cst_7 = arith.constant dense<0.000000e+00> : vector<8xf32>
    %13 = vector.multi_reduction <add>, %12, %cst_7 [1] : vector<8x10240xf32> to vector<8xf32>
    %14 = vector.shape_cast %13 : vector<8xf32> to vector<8x1xf32>
    %c0_8 = arith.constant 0 : index
    %c0_9 = arith.constant 0 : index
    %15 = vector.load %arg4[%c0_8, %c0_9] : memref<1x1xf32, #tpu.memory_space<vmem>>, vector<1x1xf32>
    %16 = vector.broadcast %15 : vector<1x1xf32> to vector<8x1xf32>
    %17 = arith.addf %14, %16 : vector<8x1xf32>
    %c0_10 = arith.constant 0 : index
    %c0_11 = arith.constant 0 : index
    %18 = vector.load %arg5[%c0_10, %c0_11] : memref<8x1xf32, #tpu.memory_space<vmem>>, vector<8x1xf32>
    tpu.vector_store %arg5[%c0_10, %c0_11], %17 {strides = array<i32>} : memref<8x1xf32, #tpu.memory_space<vmem>>, vector<8x1xf32>,
    return
  }
}

</mosaic_0001>

<llo_original>
// kernel: simple_nn_forward.1
$region0: #{simple_nn_forward.1}
  #allocation0 [shape = 'u32[]', space=smem, size = 0x4, offset = 0x4, fixed_abs, tag = 'smem constant byte address 0x4 - core index']
  #allocation1 [shape = 'u32[144,128]{1,0:T(1,128)}', space=vmem, size = 0x12000, scoped, tag = 'internal scratch']
  #allocation2 [shape = 'f32[1,1]{1,0:T(1,128)S(1)}', space=vmem, size = 0x200, scoped, tag = 'scoped memory for simple_nn_forward.1']
  %s0 = inlined_call_operand.vmem [shape: f32[8,1], index: 0, kind: input, shape index: {}]
  %s1 = inlined_call_operand.hbm [shape: f32[1,10240], index: 1, kind: input, shape index: {}]
  %s2 = inlined_call_operand.hbm [shape: f32[1,10240], index: 2, kind: input, shape index: {}]
  %s3 = inlined_call_operand.hbm [shape: f32[1,10240], index: 3, kind: input, shape index: {}]
  %s4 = inlined_call_operand.<no memory space> [shape: f32[1,1], index: 4, kind: input, shape index: {}]
  %s5 = inlined_call_operand.vmem [shape: f32[8,1], index: 5, kind: output, shape index: {}]
  %s6 = sld [smem:[#allocation0]]
  $region42: #{simple_nn_forward.1} parent=0
    _
  %s8 = ssub.s32 1, %s6
  %s9 = scalar_select 0, %s8, %s6
  %v10 = vstv %s4
  %11 = vst [vmem:[#allocation2] sm:$0x1] %v10
  $region1: #{simple_nn_forward.1} parent=0
    #allocation3 [shape = 'u8[40960]{0}', space=vmem, size = 0xa000, scoped, tag = 'input window, operand 1, single buffered']
    #allocation4 [shape = 's32[1]{0}', space=sflag, size = 0x4, scoped, tag = 'scoped memory for simple_nn_forward.1']
    #allocation5 [shape = 'u8[40960]{0}', space=vmem, size = 0xa000, scoped, tag = 'input window, operand 2, single buffered']
    #allocation6 [shape = 's32[1]{0}', space=sflag, size = 0x4, scoped, tag = 'scoped memory for simple_nn_forward.1']
    #allocation7 [shape = 'u8[40960]{0}', space=vmem, size = 0xa000, scoped, tag = 'input window, operand 3, single buffered']
    %12 = vsyncpa [#allocation4], 0
    %13 = vsyncpa [#allocation6], 0
    // Predicated region
    $region2: #{simple_nn_forward.1} parent=1 // pred_check
      _
    $region3: #{simple_nn_forward.1} parent=1 // pred_check_branch
      %15 = sbr.rel (0) target = $region5
    $region4: #{simple_nn_forward.1} parent=1 // pred_region
      _
    $region5: #{simple_nn_forward.1} parent=1 // pred_fallthru
      _
    // Predicated region
    $region6: #{simple_nn_forward.1} parent=1 // pred_check
      _
    $region7: #{simple_nn_forward.1} parent=1 // pred_check_branch
      %17 = sbr.rel (0) target = $region9
    $region8: #{simple_nn_forward.1} parent=1 // pred_region
      %s19 = ssub.s32 1280, 1280
      %20 = vsyncadd [#allocation4], %s19
      %s22 = sshll.u32 [#allocation3], 4
      %s23 = int_to_ptr.vmem [resolvable:$true] %s22
      %25 = dma.hbm_to_vmem [thread:$0]  %s1, 1280, %s23, [#allocation4]
    $region9: #{simple_nn_forward.1} parent=1 // pred_fallthru
      _
    // Predicated region
    $region10: #{simple_nn_forward.1} parent=1 // pred_check
      _
    $region11: #{simple_nn_forward.1} parent=1 // pred_check_branch
      %27 = sbr.rel (0) target = $region13
    $region12: #{simple_nn_forward.1} parent=1 // pred_region
      %s29 = ssub.s32 1280, 1280
      %30 = vsyncadd [#allocation6], %s29
      %s32 = sshll.u32 [#allocation5], 4
      %s33 = int_to_ptr.vmem [resolvable:$true] %s32
      %35 = dma.hbm_to_vmem [thread:$0]  %s2, 1280, %s33, [#allocation6]
    $region13: #{simple_nn_forward.1} parent=1 // pred_fallthru
      _
    // Predicated region
    $region14: #{simple_nn_forward.1} parent=1 // pred_check
      _
    $region15: #{simple_nn_forward.1} parent=1 // pred_check_branch
      %37 = sbr.rel (0) target = $region17
    $region16: #{simple_nn_forward.1} parent=1 // pred_region
      %s39 = ssub.s32 1280, 1280
      %40 = vsyncadd [#allocation6], %s39
      %s42 = sshll.u32 [#allocation7], 4
      %s43 = int_to_ptr.vmem [resolvable:$true] %s42
      %45 = dma.hbm_to_vmem [thread:$0]  %s3, 1280, %s43, [#allocation6]
    $region17: #{simple_nn_forward.1} parent=1 // pred_fallthru
      _
    // Predicated region
    $region18: #{simple_nn_forward.1} parent=1 // pred_check
      _
    $region19: #{simple_nn_forward.1} parent=1 // pred_check_branch
      %47 = sbr.rel (0) target = $region21
    $region20: #{simple_nn_forward.1} parent=1 // pred_region
      _
    $region21: #{simple_nn_forward.1} parent=1 // pred_fallthru
      _
    // Predicated region
    $region22: #{simple_nn_forward.1} parent=1 // pred_check
      _
    $region23: #{simple_nn_forward.1} parent=1 // pred_check_branch
      %49 = sbr.rel (0) target = $region25
    $region24: #{simple_nn_forward.1} parent=1 // pred_region
      %50 = dma.done [#allocation4], 1280
    $region25: #{simple_nn_forward.1} parent=1 // pred_fallthru
      _
    // Predicated region
    $region26: #{simple_nn_forward.1} parent=1 // pred_check
      _
    $region27: #{simple_nn_forward.1} parent=1 // pred_check_branch
      %52 = sbr.rel (0) target = $region29
    $region28: #{simple_nn_forward.1} parent=1 // pred_region
      %53 = dma.done [#allocation6], 1280
    $region29: #{simple_nn_forward.1} parent=1 // pred_fallthru
      _
    // Predicated region
    $region30: #{simple_nn_forward.1} parent=1 // pred_check
      _
    $region31: #{simple_nn_forward.1} parent=1 // pred_check_branch
      %55 = sbr.rel (0) target = $region33
    $region32: #{simple_nn_forward.1} parent=1 // pred_region
      %56 = dma.done [#allocation6], 1280
    $region33: #{simple_nn_forward.1} parent=1 // pred_fallthru
      _
    %v57 = vld [vmem:[%s0] sm:$0xff]
    %v58 = vld [vmem:[#allocation3] sm:$0xff]
    %v59 = vld [vmem:[#allocation3 + $0x8] sm:$0xff]
    %v60 = vld [vmem:[#allocation3 + $0x10] sm:$0xff]
    %v61 = vld [vmem:[#allocation3 + $0x18] sm:$0xff]
    %v62 = vld [vmem:[#allocation3 + $0x20] sm:$0xff]
    %v63 = vld [vmem:[#allocation3 + $0x28] sm:$0xff]
    %v64 = vld [vmem:[#allocation3 + $0x30] sm:$0xff]
    %v65 = vld [vmem:[#allocation3 + $0x38] sm:$0xff]
    %v66 = vld [vmem:[#allocation3 + $0x40] sm:$0xff]
    %v67 = vld [vmem:[#allocation3 + $0x48] sm:$0xff]
    %69 = vset.pattern.permute.xlu0 0
    %70 = vperm.xlu0 %69, %v57
    %v71 = vpop.permute.xlu0 %70
    %v83 = vlaneseq
    %v84 = vshrl.u32 %v83, 7
    %v85 = vsub.s32 0, %v84
    %v86 = vrot.slane %v58, %v85
    %v87 = vlaneseq
    %v88 = vshrl.u32 %v87, 7
    %v89 = vsub.s32 1, %v88
    %v90 = vrot.slane %v58, %v89
    %v91 = vlaneseq
    %v92 = vshrl.u32 %v91, 7
    %v93 = vsub.s32 2, %v92
    %v94 = vrot.slane %v58, %v93
    %v95 = vlaneseq
    %v96 = vshrl.u32 %v95, 7
    %v97 = vsub.s32 3, %v96
    %v98 = vrot.slane %v58, %v97
    %v99 = vlaneseq
    %v100 = vshrl.u32 %v99, 7
    %v101 = vsub.s32 4, %v100
    %v102 = vrot.slane %v58, %v101
    %v103 = vlaneseq
    %v104 = vshrl.u32 %v103, 7
    %v105 = vsub.s32 5, %v104
    %v106 = vrot.slane %v58, %v105
    %v107 = vlaneseq
    %v108 = vshrl.u32 %v107, 7
    %v109 = vsub.s32 6, %v108
    %v110 = vrot.slane %v58, %v109
    %v111 = vlaneseq
    %v112 = vshrl.u32 %v111, 7
    %v113 = vsub.s32 7, %v112
    %v114 = vrot.slane %v58, %v113
    %v115 = vlaneseq
    %v116 = vshrl.u32 %v115, 7
    %v117 = vsub.s32 0, %v116
    %v118 = vrot.slane %v59, %v117
    %v119 = vlaneseq
    %v120 = vshrl.u32 %v119, 7
    %v121 = vsub.s32 1, %v120
    %v122 = vrot.slane %v59, %v121
    %v123 = vlaneseq
    %v124 = vshrl.u32 %v123, 7
    %v125 = vsub.s32 2, %v124
    %v126 = vrot.slane %v59, %v125
    %v127 = vlaneseq
    %v128 = vshrl.u32 %v127, 7
    %v129 = vsub.s32 3, %v128
    %v130 = vrot.slane %v59, %v129
    %v131 = vlaneseq
    %v132 = vshrl.u32 %v131, 7
    %v133 = vsub.s32 4, %v132
    %v134 = vrot.slane %v59, %v133
    %v135 = vlaneseq
    %v136 = vshrl.u32 %v135, 7
    %v137 = vsub.s32 5, %v136
    %v138 = vrot.slane %v59, %v137
    %v139 = vlaneseq
    %v140 = vshrl.u32 %v139, 7
    %v141 = vsub.s32 6, %v140
    %v142 = vrot.slane %v59, %v141
    %v143 = vlaneseq
    %v144 = vshrl.u32 %v143, 7
    %v145 = vsub.s32 7, %v144
    %v146 = vrot.slane %v59, %v145
    %v147 = vlaneseq
    %v148 = vshrl.u32 %v147, 7
    %v149 = vsub.s32 0, %v148
    %v150 = vrot.slane %v60, %v149
    %v151 = vlaneseq
    %v152 = vshrl.u32 %v151, 7
    %v153 = vsub.s32 1, %v152
    %v154 = vrot.slane %v60, %v153
    %v155 = vlaneseq
    %v156 = vshrl.u32 %v155, 7
    %v157 = vsub.s32 2, %v156
    %v158 = vrot.slane %v60, %v157
    %v159 = vlaneseq
    %v160 = vshrl.u32 %v159, 7
    %v161 = vsub.s32 3, %v160
    %v162 = vrot.slane %v60, %v161
    %v163 = vlaneseq
    %v164 = vshrl.u32 %v163, 7
    %v165 = vsub.s32 4, %v164
    %v166 = vrot.slane %v60, %v165
    %v167 = vlaneseq
    %v168 = vshrl.u32 %v167, 7
    %v169 = vsub.s32 5, %v168
    %v170 = vrot.slane %v60, %v169
    %v171 = vlaneseq
    %v172 = vshrl.u32 %v171, 7
    %v173 = vsub.s32 6, %v172
    %v174 = vrot.slane %v60, %v173
    %v175 = vlaneseq
    %v176 = vshrl.u32 %v175, 7
    %v177 = vsub.s32 7, %v176
    %v178 = vrot.slane %v60, %v177
    %v179 = vlaneseq
    %v180 = vshrl.u32 %v179, 7
    %v181 = vsub.s32 0, %v180
    %v182 = vrot.slane %v61, %v181
    %v183 = vlaneseq
    %v184 = vshrl.u32 %v183, 7
    %v185 = vsub.s32 1, %v184
    %v186 = vrot.slane %v61, %v185
    %v187 = vlaneseq
    %v188 = vshrl.u32 %v187, 7
    %v189 = vsub.s32 2, %v188
    %v190 = vrot.slane %v61, %v189
    %v191 = vlaneseq
    %v192 = vshrl.u32 %v191, 7
    %v193 = vsub.s32 3, %v192
    %v194 = vrot.slane %v61, %v193
    %v195 = vlaneseq
    %v196 = vshrl.u32 %v195, 7
    %v197 = vsub.s32 4, %v196
    %v198 = vrot.slane %v61, %v197
    %v199 = vlaneseq
    %v200 = vshrl.u32 %v199, 7
    %v201 = vsub.s32 5, %v200
    %v202 = vrot.slane %v61, %v201
    %v203 = vlaneseq
    %v204 = vshrl.u32 %v203, 7
    %v205 = vsub.s32 6, %v204
    %v206 = vrot.slane %v61, %v205
    %v207 = vlaneseq
    %v208 = vshrl.u32 %v207, 7
    %v209 = vsub.s32 7, %v208
    %v210 = vrot.slane %v61, %v209
    %v211 = vlaneseq
    %v212 = vshrl.u32 %v211, 7
    %v213 = vsub.s32 0, %v212
    %v214 = vrot.slane %v62, %v213
    %v215 = vlaneseq
    %v216 = vshrl.u32 %v215, 7
    %v217 = vsub.s32 1, %v216
    %v218 = vrot.slane %v62, %v217
    %v219 = vlaneseq
    %v220 = vshrl.u32 %v219, 7
    %v221 = vsub.s32 2, %v220
    %v222 = vrot.slane %v62, %v221
    %v223 = vlaneseq
    %v224 = vshrl.u32 %v223, 7
    %v225 = vsub.s32 3, %v224
    %v226 = vrot.slane %v62, %v225
    %v227 = vlaneseq
    %v228 = vshrl.u32 %v227, 7
    %v229 = vsub.s32 4, %v228
    %v230 = vrot.slane %v62, %v229
    %v231 = vlaneseq
    %v232 = vshrl.u32 %v231, 7
    %v233 = vsub.s32 5, %v232
    %v234 = vrot.slane %v62, %v233
    %v235 = vlaneseq
    %v236 = vshrl.u32 %v235, 7
    %v237 = vsub.s32 6, %v236
    %v238 = vrot.slane %v62, %v237
    %v239 = vlaneseq
    %v240 = vshrl.u32 %v239, 7
    %v241 = vsub.s32 7, %v240
    %v242 = vrot.slane %v62, %v241
    %v243 = vlaneseq
    %v244 = vshrl.u32 %v243, 7
    %v245 = vsub.s32 0, %v244
    %v246 = vrot.slane %v63, %v245
    %v247 = vlaneseq
    %v248 = vshrl.u32 %v247, 7
    %v249 = vsub.s32 1, %v248
    %v250 = vrot.slane %v63, %v249
    %v251 = vlaneseq
    %v252 = vshrl.u32 %v251, 7
    %v253 = vsub.s32 2, %v252
    %v254 = vrot.slane %v63, %v253
    %v255 = vlaneseq
    %v256 = vshrl.u32 %v255, 7
    %v257 = vsub.s32 3, %v256
    %v258 = vrot.slane %v63, %v257
    %v259 = vlaneseq
    %v260 = vshrl.u32 %v259, 7
    %v261 = vsub.s32 4, %v260
    %v262 = vrot.slane %v63, %v261
    %v263 = vlaneseq
    %v264 = vshrl.u32 %v263, 7
    %v265 = vsub.s32 5, %v264
    %v266 = vrot.slane %v63, %v265
    %v267 = vlaneseq
    %v268 = vshrl.u32 %v267, 7
    %v269 = vsub.s32 6, %v268
    %v270 = vrot.slane %v63, %v269
    %v271 = vlaneseq
    %v272 = vshrl.u32 %v271, 7
    %v273 = vsub.s32 7, %v272
    %v274 = vrot.slane %v63, %v273
    %v275 = vlaneseq
    %v276 = vshrl.u32 %v275, 7
    %v277 = vsub.s32 0, %v276
    %v278 = vrot.slane %v64, %v277
    %v279 = vlaneseq
    %v280 = vshrl.u32 %v279, 7
    %v281 = vsub.s32 1, %v280
    %v282 = vrot.slane %v64, %v281
    %v283 = vlaneseq
    %v284 = vshrl.u32 %v283, 7
    %v285 = vsub.s32 2, %v284
    %v286 = vrot.slane %v64, %v285
    %v287 = vlaneseq
    %v288 = vshrl.u32 %v287, 7
    %v289 = vsub.s32 3, %v288
    %v290 = vrot.slane %v64, %v289
    %v291 = vlaneseq
    %v292 = vshrl.u32 %v291, 7
    %v293 = vsub.s32 4, %v292
    %v294 = vrot.slane %v64, %v293
    %v295 = vlaneseq
    %v296 = vshrl.u32 %v295, 7
    %v297 = vsub.s32 5, %v296
    %v298 = vrot.slane %v64, %v297
    %v299 = vlaneseq
    %v300 = vshrl.u32 %v299, 7
    %v301 = vsub.s32 6, %v300
    %v302 = vrot.slane %v64, %v301
    %v303 = vlaneseq
    %v304 = vshrl.u32 %v303, 7
    %v305 = vsub.s32 7, %v304
    %v306 = vrot.slane %v64, %v305
    %v307 = vlaneseq
    %v308 = vshrl.u32 %v307, 7
    %v309 = vsub.s32 0, %v308
    %v310 = vrot.slane %v65, %v309
    %v311 = vlaneseq
    %v312 = vshrl.u32 %v311, 7
    %v313 = vsub.s32 1, %v312
    %v314 = vrot.slane %v65, %v313
    %v315 = vlaneseq
    %v316 = vshrl.u32 %v315, 7
    %v317 = vsub.s32 2, %v316
    %v318 = vrot.slane %v65, %v317
    %v319 = vlaneseq
    %v320 = vshrl.u32 %v319, 7
    %v321 = vsub.s32 3, %v320
    %v322 = vrot.slane %v65, %v321
    %v323 = vlaneseq
    %v324 = vshrl.u32 %v323, 7
    %v325 = vsub.s32 4, %v324
    %v326 = vrot.slane %v65, %v325
    %v327 = vlaneseq
    %v328 = vshrl.u32 %v327, 7
    %v329 = vsub.s32 5, %v328
    %v330 = vrot.slane %v65, %v329
    %v331 = vlaneseq
    %v332 = vshrl.u32 %v331, 7
    %v333 = vsub.s32 6, %v332
    %v334 = vrot.slane %v65, %v333
    %v335 = vlaneseq
    %v336 = vshrl.u32 %v335, 7
    %v337 = vsub.s32 7, %v336
    %v338 = vrot.slane %v65, %v337
    %v339 = vlaneseq
    %v340 = vshrl.u32 %v339, 7
    %v341 = vsub.s32 0, %v340
    %v342 = vrot.slane %v66, %v341
    %v343 = vlaneseq
    %v344 = vshrl.u32 %v343, 7
    %v345 = vsub.s32 1, %v344
    %v346 = vrot.slane %v66, %v345
    %v347 = vlaneseq
    %v348 = vshrl.u32 %v347, 7
    %v349 = vsub.s32 2, %v348
    %v350 = vrot.slane %v66, %v349
    %v351 = vlaneseq
    %v352 = vshrl.u32 %v351, 7
    %v353 = vsub.s32 3, %v352
    %v354 = vrot.slane %v66, %v353
    %v355 = vlaneseq
    %v356 = vshrl.u32 %v355, 7
    %v357 = vsub.s32 4, %v356
    %v358 = vrot.slane %v66, %v357
    %v359 = vlaneseq
    %v360 = vshrl.u32 %v359, 7
    %v361 = vsub.s32 5, %v360
    %v362 = vrot.slane %v66, %v361
    %v363 = vlaneseq
    %v364 = vshrl.u32 %v363, 7
    %v365 = vsub.s32 6, %v364
    %v366 = vrot.slane %v66, %v365
    %v367 = vlaneseq
    %v368 = vshrl.u32 %v367, 7
    %v369 = vsub.s32 7, %v368
    %v370 = vrot.slane %v66, %v369
    %v371 = vlaneseq
    %v372 = vshrl.u32 %v371, 7
    %v373 = vsub.s32 0, %v372
    %v374 = vrot.slane %v67, %v373
    %v375 = vlaneseq
    %v376 = vshrl.u32 %v375, 7
    %v377 = vsub.s32 1, %v376
    %v378 = vrot.slane %v67, %v377
    %v379 = vlaneseq
    %v380 = vshrl.u32 %v379, 7
    %v381 = vsub.s32 2, %v380
    %v382 = vrot.slane %v67, %v381
    %v383 = vlaneseq
    %v384 = vshrl.u32 %v383, 7
    %v385 = vsub.s32 3, %v384
    %v386 = vrot.slane %v67, %v385
    %v387 = vlaneseq
    %v388 = vshrl.u32 %v387, 7
    %v389 = vsub.s32 4, %v388
    %v390 = vrot.slane %v67, %v389
    %v391 = vlaneseq
    %v392 = vshrl.u32 %v391, 7
    %v393 = vsub.s32 5, %v392
    %v394 = vrot.slane %v67, %v393
    %v395 = vlaneseq
    %v396 = vshrl.u32 %v395, 7
    %v397 = vsub.s32 6, %v396
    %v398 = vrot.slane %v67, %v397
    %v399 = vlaneseq
    %v400 = vshrl.u32 %v399, 7
    %v401 = vsub.s32 7, %v400
    %v402 = vrot.slane %v67, %v401
    %v483 = vmul.f32 %v71, %v86
    %v484 = vmul.f32 %v71, %v90
    %v485 = vmul.f32 %v71, %v94
    %v486 = vmul.f32 %v71, %v98
    %v487 = vmul.f32 %v71, %v102
    %v488 = vmul.f32 %v71, %v106
    %v489 = vmul.f32 %v71, %v110
    %v490 = vmul.f32 %v71, %v114
    %v491 = vmul.f32 %v71, %v118
    %v492 = vmul.f32 %v71, %v122
    %v493 = vmul.f32 %v71, %v126
    %v494 = vmul.f32 %v71, %v130
    %v495 = vmul.f32 %v71, %v134
    %v496 = vmul.f32 %v71, %v138
    %v497 = vmul.f32 %v71, %v142
    %v498 = vmul.f32 %v71, %v146
    %v499 = vmul.f32 %v71, %v150
    %v500 = vmul.f32 %v71, %v154
    %v501 = vmul.f32 %v71, %v158
    %v502 = vmul.f32 %v71, %v162
    %v503 = vmul.f32 %v71, %v166
    %v504 = vmul.f32 %v71, %v170
    %v505 = vmul.f32 %v71, %v174
    %v506 = vmul.f32 %v71, %v178
    %v507 = vmul.f32 %v71, %v182
    %v508 = vmul.f32 %v71, %v186
    %v509 = vmul.f32 %v71, %v190
    %v510 = vmul.f32 %v71, %v194
    %v511 = vmul.f32 %v71, %v198
    %v512 = vmul.f32 %v71, %v202
    %v513 = vmul.f32 %v71, %v206
    %v514 = vmul.f32 %v71, %v210
    %v515 = vmul.f32 %v71, %v214
    %v516 = vmul.f32 %v71, %v218
    %v517 = vmul.f32 %v71, %v222
    %v518 = vmul.f32 %v71, %v226
    %v519 = vmul.f32 %v71, %v230
    %v520 = vmul.f32 %v71, %v234
    %v521 = vmul.f32 %v71, %v238
    %v522 = vmul.f32 %v71, %v242
    %v523 = vmul.f32 %v71, %v246
    %v524 = vmul.f32 %v71, %v250
    %v525 = vmul.f32 %v71, %v254
    %v526 = vmul.f32 %v71, %v258
    %v527 = vmul.f32 %v71, %v262
    %v528 = vmul.f32 %v71, %v266
    %v529 = vmul.f32 %v71, %v270
    %v530 = vmul.f32 %v71, %v274
    %v531 = vmul.f32 %v71, %v278
    %v532 = vmul.f32 %v71, %v282
    %v533 = vmul.f32 %v71, %v286
    %v534 = vmul.f32 %v71, %v290
    %v535 = vmul.f32 %v71, %v294
    %v536 = vmul.f32 %v71, %v298
    %v537 = vmul.f32 %v71, %v302
    %v538 = vmul.f32 %v71, %v306
    %v539 = vmul.f32 %v71, %v310
    %v540 = vmul.f32 %v71, %v314
    %v541 = vmul.f32 %v71, %v318
    %v542 = vmul.f32 %v71, %v322
    %v543 = vmul.f32 %v71, %v326
    %v544 = vmul.f32 %v71, %v330
    %v545 = vmul.f32 %v71, %v334
    %v546 = vmul.f32 %v71, %v338
    %v547 = vmul.f32 %v71, %v342
    %v548 = vmul.f32 %v71, %v346
    %v549 = vmul.f32 %v71, %v350
    %v550 = vmul.f32 %v71, %v354
    %v551 = vmul.f32 %v71, %v358
    %v552 = vmul.f32 %v71, %v362
    %v553 = vmul.f32 %v71, %v366
    %v554 = vmul.f32 %v71, %v370
    %v555 = vmul.f32 %v71, %v374
    %v556 = vmul.f32 %v71, %v378
    %v557 = vmul.f32 %v71, %v382
    %v558 = vmul.f32 %v71, %v386
    %v559 = vmul.f32 %v71, %v390
    %v560 = vmul.f32 %v71, %v394
    %v561 = vmul.f32 %v71, %v398
    %v562 = vmul.f32 %v71, %v402
    %v563 = vld [vmem:[#allocation5] sm:$0xff]
    %v564 = vld [vmem:[#allocation5 + $0x8] sm:$0xff]
    %v565 = vld [vmem:[#allocation5 + $0x10] sm:$0xff]
    %v566 = vld [vmem:[#allocation5 + $0x18] sm:$0xff]
    %v567 = vld [vmem:[#allocation5 + $0x20] sm:$0xff]
    %v568 = vld [vmem:[#allocation5 + $0x28] sm:$0xff]
    %v569 = vld [vmem:[#allocation5 + $0x30] sm:$0xff]
    %v570 = vld [vmem:[#allocation5 + $0x38] sm:$0xff]
    %v571 = vld [vmem:[#allocation5 + $0x40] sm:$0xff]
    %v572 = vld [vmem:[#allocation5 + $0x48] sm:$0xff]
    %v583 = vlaneseq
    %v584 = vshrl.u32 %v583, 7
    %v585 = vsub.s32 0, %v584
    %v586 = vrot.slane %v563, %v585
    %v587 = vlaneseq
    %v588 = vshrl.u32 %v587, 7
    %v589 = vsub.s32 1, %v588
    %v590 = vrot.slane %v563, %v589
    %v591 = vlaneseq
    %v592 = vshrl.u32 %v591, 7
    %v593 = vsub.s32 2, %v592
    %v594 = vrot.slane %v563, %v593
    %v595 = vlaneseq
    %v596 = vshrl.u32 %v595, 7
    %v597 = vsub.s32 3, %v596
    %v598 = vrot.slane %v563, %v597
    %v599 = vlaneseq
    %v600 = vshrl.u32 %v599, 7
    %v601 = vsub.s32 4, %v600
    %v602 = vrot.slane %v563, %v601
    %v603 = vlaneseq
    %v604 = vshrl.u32 %v603, 7
    %v605 = vsub.s32 5, %v604
    %v606 = vrot.slane %v563, %v605
    %v607 = vlaneseq
    %v608 = vshrl.u32 %v607, 7
    %v609 = vsub.s32 6, %v608
    %v610 = vrot.slane %v563, %v609
    %v611 = vlaneseq
    %v612 = vshrl.u32 %v611, 7
    %v613 = vsub.s32 7, %v612
    %v614 = vrot.slane %v563, %v613
    %v615 = vlaneseq
    %v616 = vshrl.u32 %v615, 7
    %v617 = vsub.s32 0, %v616
    %v618 = vrot.slane %v564, %v617
    %v619 = vlaneseq
    %v620 = vshrl.u32 %v619, 7
    %v621 = vsub.s32 1, %v620
    %v622 = vrot.slane %v564, %v621
    %v623 = vlaneseq
    %v624 = vshrl.u32 %v623, 7
    %v625 = vsub.s32 2, %v624
    %v626 = vrot.slane %v564, %v625
    %v627 = vlaneseq
    %v628 = vshrl.u32 %v627, 7
    %v629 = vsub.s32 3, %v628
    %v630 = vrot.slane %v564, %v629
    %v631 = vlaneseq
    %v632 = vshrl.u32 %v631, 7
    %v633 = vsub.s32 4, %v632
    %v634 = vrot.slane %v564, %v633
    %v635 = vlaneseq
    %v636 = vshrl.u32 %v635, 7
    %v637 = vsub.s32 5, %v636
    %v638 = vrot.slane %v564, %v637
    %v639 = vlaneseq
    %v640 = vshrl.u32 %v639, 7
    %v641 = vsub.s32 6, %v640
    %v642 = vrot.slane %v564, %v641
    %v643 = vlaneseq
    %v644 = vshrl.u32 %v643, 7
    %v645 = vsub.s32 7, %v644
    %v646 = vrot.slane %v564, %v645
    %v647 = vlaneseq
    %v648 = vshrl.u32 %v647, 7
    %v649 = vsub.s32 0, %v648
    %v650 = vrot.slane %v565, %v649
    %v651 = vlaneseq
    %v652 = vshrl.u32 %v651, 7
    %v653 = vsub.s32 1, %v652
    %v654 = vrot.slane %v565, %v653
    %v655 = vlaneseq
    %v656 = vshrl.u32 %v655, 7
    %v657 = vsub.s32 2, %v656
    %v658 = vrot.slane %v565, %v657
    %v659 = vlaneseq
    %v660 = vshrl.u32 %v659, 7
    %v661 = vsub.s32 3, %v660
    %v662 = vrot.slane %v565, %v661
    %v663 = vlaneseq
    %v664 = vshrl.u32 %v663, 7
    %v665 = vsub.s32 4, %v664
    %v666 = vrot.slane %v565, %v665
    %v667 = vlaneseq
    %v668 = vshrl.u32 %v667, 7
    %v669 = vsub.s32 5, %v668
    %v670 = vrot.slane %v565, %v669
    %v671 = vlaneseq
    %v672 = vshrl.u32 %v671, 7
    %v673 = vsub.s32 6, %v672
    %v674 = vrot.slane %v565, %v673
    %v675 = vlaneseq
    %v676 = vshrl.u32 %v675, 7
    %v677 = vsub.s32 7, %v676
    %v678 = vrot.slane %v565, %v677
    %v679 = vlaneseq
    %v680 = vshrl.u32 %v679, 7
    %v681 = vsub.s32 0, %v680
    %v682 = vrot.slane %v566, %v681
    %v683 = vlaneseq
    %v684 = vshrl.u32 %v683, 7
    %v685 = vsub.s32 1, %v684
    %v686 = vrot.slane %v566, %v685
    %v687 = vlaneseq
    %v688 = vshrl.u32 %v687, 7
    %v689 = vsub.s32 2, %v688
    %v690 = vrot.slane %v566, %v689
    %v691 = vlaneseq
    %v692 = vshrl.u32 %v691, 7
    %v693 = vsub.s32 3, %v692
    %v694 = vrot.slane %v566, %v693
    %v695 = vlaneseq
    %v696 = vshrl.u32 %v695, 7
    %v697 = vsub.s32 4, %v696
    %v698 = vrot.slane %v566, %v697
    %v699 = vlaneseq
    %v700 = vshrl.u32 %v699, 7
    %v701 = vsub.s32 5, %v700
    %v702 = vrot.slane %v566, %v701
    %v703 = vlaneseq
    %v704 = vshrl.u32 %v703, 7
    %v705 = vsub.s32 6, %v704
    %v706 = vrot.slane %v566, %v705
    %v707 = vlaneseq
    %v708 = vshrl.u32 %v707, 7
    %v709 = vsub.s32 7, %v708
    %v710 = vrot.slane %v566, %v709
    %v711 = vlaneseq
    %v712 = vshrl.u32 %v711, 7
    %v713 = vsub.s32 0, %v712
    %v714 = vrot.slane %v567, %v713
    %v715 = vlaneseq
    %v716 = vshrl.u32 %v715, 7
    %v717 = vsub.s32 1, %v716
    %v718 = vrot.slane %v567, %v717
    %v719 = vlaneseq
    %v720 = vshrl.u32 %v719, 7
    %v721 = vsub.s32 2, %v720
    %v722 = vrot.slane %v567, %v721
    %v723 = vlaneseq
    %v724 = vshrl.u32 %v723, 7
    %v725 = vsub.s32 3, %v724
    %v726 = vrot.slane %v567, %v725
    %v727 = vlaneseq
    %v728 = vshrl.u32 %v727, 7
    %v729 = vsub.s32 4, %v728
    %v730 = vrot.slane %v567, %v729
    %v731 = vlaneseq
    %v732 = vshrl.u32 %v731, 7
    %v733 = vsub.s32 5, %v732
    %v734 = vrot.slane %v567, %v733
    %v735 = vlaneseq
    %v736 = vshrl.u32 %v735, 7
    %v737 = vsub.s32 6, %v736
    %v738 = vrot.slane %v567, %v737
    %v739 = vlaneseq
    %v740 = vshrl.u32 %v739, 7
    %v741 = vsub.s32 7, %v740
    %v742 = vrot.slane %v567, %v741
    %v743 = vlaneseq
    %v744 = vshrl.u32 %v743, 7
    %v745 = vsub.s32 0, %v744
    %v746 = vrot.slane %v568, %v745
    %v747 = vlaneseq
    %v748 = vshrl.u32 %v747, 7
    %v749 = vsub.s32 1, %v748
    %v750 = vrot.slane %v568, %v749
    %v751 = vlaneseq
    %v752 = vshrl.u32 %v751, 7
    %v753 = vsub.s32 2, %v752
    %v754 = vrot.slane %v568, %v753
    %v755 = vlaneseq
    %v756 = vshrl.u32 %v755, 7
    %v757 = vsub.s32 3, %v756
    %v758 = vrot.slane %v568, %v757
    %v759 = vlaneseq
    %v760 = vshrl.u32 %v759, 7
    %v761 = vsub.s32 4, %v760
    %v762 = vrot.slane %v568, %v761
    %v763 = vlaneseq
    %v764 = vshrl.u32 %v763, 7
    %v765 = vsub.s32 5, %v764
    %v766 = vrot.slane %v568, %v765
    %v767 = vlaneseq
    %v768 = vshrl.u32 %v767, 7
    %v769 = vsub.s32 6, %v768
    %v770 = vrot.slane %v568, %v769
    %v771 = vlaneseq
    %v772 = vshrl.u32 %v771, 7
    %v773 = vsub.s32 7, %v772
    %v774 = vrot.slane %v568, %v773
    %v775 = vlaneseq
    %v776 = vshrl.u32 %v775, 7
    %v777 = vsub.s32 0, %v776
    %v778 = vrot.slane %v569, %v777
    %v779 = vlaneseq
    %v780 = vshrl.u32 %v779, 7
    %v781 = vsub.s32 1, %v780
    %v782 = vrot.slane %v569, %v781
    %v783 = vlaneseq
    %v784 = vshrl.u32 %v783, 7
    %v785 = vsub.s32 2, %v784
    %v786 = vrot.slane %v569, %v785
    %v787 = vlaneseq
    %v788 = vshrl.u32 %v787, 7
    %v789 = vsub.s32 3, %v788
    %v790 = vrot.slane %v569, %v789
    %v791 = vlaneseq
    %v792 = vshrl.u32 %v791, 7
    %v793 = vsub.s32 4, %v792
    %v794 = vrot.slane %v569, %v793
    %v795 = vlaneseq
    %v796 = vshrl.u32 %v795, 7
    %v797 = vsub.s32 5, %v796
    %v798 = vrot.slane %v569, %v797
    %v799 = vlaneseq
    %v800 = vshrl.u32 %v799, 7
    %v801 = vsub.s32 6, %v800
    %v802 = vrot.slane %v569, %v801
    %v803 = vlaneseq
    %v804 = vshrl.u32 %v803, 7
    %v805 = vsub.s32 7, %v804
    %v806 = vrot.slane %v569, %v805
    %v807 = vlaneseq
    %v808 = vshrl.u32 %v807, 7
    %v809 = vsub.s32 0, %v808
    %v810 = vrot.slane %v570, %v809
    %v811 = vlaneseq
    %v812 = vshrl.u32 %v811, 7
    %v813 = vsub.s32 1, %v812
    %v814 = vrot.slane %v570, %v813
    %v815 = vlaneseq
    %v816 = vshrl.u32 %v815, 7
    %v817 = vsub.s32 2, %v816
    %v818 = vrot.slane %v570, %v817
    %v819 = vlaneseq
    %v820 = vshrl.u32 %v819, 7
    %v821 = vsub.s32 3, %v820
    %v822 = vrot.slane %v570, %v821
    %v823 = vlaneseq
    %v824 = vshrl.u32 %v823, 7
    %v825 = vsub.s32 4, %v824
    %v826 = vrot.slane %v570, %v825
    %v827 = vlaneseq
    %v828 = vshrl.u32 %v827, 7
    %v829 = vsub.s32 5, %v828
    %v830 = vrot.slane %v570, %v829
    %v831 = vlaneseq
    %v832 = vshrl.u32 %v831, 7
    %v833 = vsub.s32 6, %v832
    %v834 = vrot.slane %v570, %v833
    %v835 = vlaneseq
    %v836 = vshrl.u32 %v835, 7
    %v837 = vsub.s32 7, %v836
    %v838 = vrot.slane %v570, %v837
    %v839 = vlaneseq
    %v840 = vshrl.u32 %v839, 7
    %v841 = vsub.s32 0, %v840
    %v842 = vrot.slane %v571, %v841
    %v843 = vlaneseq
    %v844 = vshrl.u32 %v843, 7
    %v845 = vsub.s32 1, %v844
    %v846 = vrot.slane %v571, %v845
    %v847 = vlaneseq
    %v848 = vshrl.u32 %v847, 7
    %v849 = vsub.s32 2, %v848
    %v850 = vrot.slane %v571, %v849
    %v851 = vlaneseq
    %v852 = vshrl.u32 %v851, 7
    %v853 = vsub.s32 3, %v852
    %v854 = vrot.slane %v571, %v853
    %v855 = vlaneseq
    %v856 = vshrl.u32 %v855, 7
    %v857 = vsub.s32 4, %v856
    %v858 = vrot.slane %v571, %v857
    %v859 = vlaneseq
    %v860 = vshrl.u32 %v859, 7
    %v861 = vsub.s32 5, %v860
    %v862 = vrot.slane %v571, %v861
    %v863 = vlaneseq
    %v864 = vshrl.u32 %v863, 7
    %v865 = vsub.s32 6, %v864
    %v866 = vrot.slane %v571, %v865
    %v867 = vlaneseq
    %v868 = vshrl.u32 %v867, 7
    %v869 = vsub.s32 7, %v868
    %v870 = vrot.slane %v571, %v869
    %v871 = vlaneseq
    %v872 = vshrl.u32 %v871, 7
    %v873 = vsub.s32 0, %v872
    %v874 = vrot.slane %v572, %v873
    %v875 = vlaneseq
    %v876 = vshrl.u32 %v875, 7
    %v877 = vsub.s32 1, %v876
    %v878 = vrot.slane %v572, %v877
    %v879 = vlaneseq
    %v880 = vshrl.u32 %v879, 7
    %v881 = vsub.s32 2, %v880
    %v882 = vrot.slane %v572, %v881
    %v883 = vlaneseq
    %v884 = vshrl.u32 %v883, 7
    %v885 = vsub.s32 3, %v884
    %v886 = vrot.slane %v572, %v885
    %v887 = vlaneseq
    %v888 = vshrl.u32 %v887, 7
    %v889 = vsub.s32 4, %v888
    %v890 = vrot.slane %v572, %v889
    %v891 = vlaneseq
    %v892 = vshrl.u32 %v891, 7
    %v893 = vsub.s32 5, %v892
    %v894 = vrot.slane %v572, %v893
    %v895 = vlaneseq
    %v896 = vshrl.u32 %v895, 7
    %v897 = vsub.s32 6, %v896
    %v898 = vrot.slane %v572, %v897
    %v899 = vlaneseq
    %v900 = vshrl.u32 %v899, 7
    %v901 = vsub.s32 7, %v900
    %v902 = vrot.slane %v572, %v901
    %v983 = vadd.f32 %v483, %v586
    %v984 = vadd.f32 %v484, %v590
    %v985 = vadd.f32 %v485, %v594
    %v986 = vadd.f32 %v486, %v598
    %v987 = vadd.f32 %v487, %v602
    %v988 = vadd.f32 %v488, %v606
    %v989 = vadd.f32 %v489, %v610
    %v990 = vadd.f32 %v490, %v614
    %v991 = vadd.f32 %v491, %v618
    %v992 = vadd.f32 %v492, %v622
    %v993 = vadd.f32 %v493, %v626
    %v994 = vadd.f32 %v494, %v630
    %v995 = vadd.f32 %v495, %v634
    %v996 = vadd.f32 %v496, %v638
    %v997 = vadd.f32 %v497, %v642
    %v998 = vadd.f32 %v498, %v646
    %v999 = vadd.f32 %v499, %v650
    %v1000 = vadd.f32 %v500, %v654
    %v1001 = vadd.f32 %v501, %v658
    %v1002 = vadd.f32 %v502, %v662
    %v1003 = vadd.f32 %v503, %v666
    %v1004 = vadd.f32 %v504, %v670
    %v1005 = vadd.f32 %v505, %v674
    %v1006 = vadd.f32 %v506, %v678
    %v1007 = vadd.f32 %v507, %v682
    %v1008 = vadd.f32 %v508, %v686
    %v1009 = vadd.f32 %v509, %v690
    %v1010 = vadd.f32 %v510, %v694
    %v1011 = vadd.f32 %v511, %v698
    %v1012 = vadd.f32 %v512, %v702
    %v1013 = vadd.f32 %v513, %v706
    %v1014 = vadd.f32 %v514, %v710
    %v1015 = vadd.f32 %v515, %v714
    %v1016 = vadd.f32 %v516, %v718
    %v1017 = vadd.f32 %v517, %v722
    %v1018 = vadd.f32 %v518, %v726
    %v1019 = vadd.f32 %v519, %v730
    %v1020 = vadd.f32 %v520, %v734
    %v1021 = vadd.f32 %v521, %v738
    %v1022 = vadd.f32 %v522, %v742
    %v1023 = vadd.f32 %v523, %v746
    %v1024 = vadd.f32 %v524, %v750
    %v1025 = vadd.f32 %v525, %v754
    %v1026 = vadd.f32 %v526, %v758
    %v1027 = vadd.f32 %v527, %v762
    %v1028 = vadd.f32 %v528, %v766
    %v1029 = vadd.f32 %v529, %v770
    %v1030 = vadd.f32 %v530, %v774
    %v1031 = vadd.f32 %v531, %v778
    %v1032 = vadd.f32 %v532, %v782
    %v1033 = vadd.f32 %v533, %v786
    %v1034 = vadd.f32 %v534, %v790
    %v1035 = vadd.f32 %v535, %v794
    %v1036 = vadd.f32 %v536, %v798
    %v1037 = vadd.f32 %v537, %v802
    %v1038 = vadd.f32 %v538, %v806
    %v1039 = vadd.f32 %v539, %v810
    %v1040 = vadd.f32 %v540, %v814
    %v1041 = vadd.f32 %v541, %v818
    %v1042 = vadd.f32 %v542, %v822
    %v1043 = vadd.f32 %v543, %v826
    %v1044 = vadd.f32 %v544, %v830
    %v1045 = vadd.f32 %v545, %v834
    %v1046 = vadd.f32 %v546, %v838
    %v1047 = vadd.f32 %v547, %v842
    %v1048 = vadd.f32 %v548, %v846
    %v1049 = vadd.f32 %v549, %v850
    %v1050 = vadd.f32 %v550, %v854
    %v1051 = vadd.f32 %v551, %v858
    %v1052 = vadd.f32 %v552, %v862
    %v1053 = vadd.f32 %v553, %v866
    %v1054 = vadd.f32 %v554, %v870
    %v1055 = vadd.f32 %v555, %v874
    %v1056 = vadd.f32 %v556, %v878
    %v1057 = vadd.f32 %v557, %v882
    %v1058 = vadd.f32 %v558, %v886
    %v1059 = vadd.f32 %v559, %v890
    %v1060 = vadd.f32 %v560, %v894
    %v1061 = vadd.f32 %v561, %v898
    %v1062 = vadd.f32 %v562, %v902
    %v1063 = vmax.f32 %v983, 0.0
    %v1064 = vmax.f32 %v984, 0.0
    %v1065 = vmax.f32 %v985, 0.0
    %v1066 = vmax.f32 %v986, 0.0
    %v1067 = vmax.f32 %v987, 0.0
    %v1068 = vmax.f32 %v988, 0.0
    %v1069 = vmax.f32 %v989, 0.0
    %v1070 = vmax.f32 %v990, 0.0
    %v1071 = vmax.f32 %v991, 0.0
    %v1072 = vmax.f32 %v992, 0.0
    %v1073 = vmax.f32 %v993, 0.0
    %v1074 = vmax.f32 %v994, 0.0
    %v1075 = vmax.f32 %v995, 0.0
    %v1076 = vmax.f32 %v996, 0.0
    %v1077 = vmax.f32 %v997, 0.0
    %v1078 = vmax.f32 %v998, 0.0
    %v1079 = vmax.f32 %v999, 0.0
    %v1080 = vmax.f32 %v1000, 0.0
    %v1081 = vmax.f32 %v1001, 0.0
    %v1082 = vmax.f32 %v1002, 0.0
    %v1083 = vmax.f32 %v1003, 0.0
    %v1084 = vmax.f32 %v1004, 0.0
    %v1085 = vmax.f32 %v1005, 0.0
    %v1086 = vmax.f32 %v1006, 0.0
    %v1087 = vmax.f32 %v1007, 0.0
    %v1088 = vmax.f32 %v1008, 0.0
    %v1089 = vmax.f32 %v1009, 0.0
    %v1090 = vmax.f32 %v1010, 0.0
    %v1091 = vmax.f32 %v1011, 0.0
    %v1092 = vmax.f32 %v1012, 0.0
    %v1093 = vmax.f32 %v1013, 0.0
    %v1094 = vmax.f32 %v1014, 0.0
    %v1095 = vmax.f32 %v1015, 0.0
    %v1096 = vmax.f32 %v1016, 0.0
    %v1097 = vmax.f32 %v1017, 0.0
    %v1098 = vmax.f32 %v1018, 0.0
    %v1099 = vmax.f32 %v1019, 0.0
    %v1100 = vmax.f32 %v1020, 0.0
    %v1101 = vmax.f32 %v1021, 0.0
    %v1102 = vmax.f32 %v1022, 0.0
    %v1103 = vmax.f32 %v1023, 0.0
    %v1104 = vmax.f32 %v1024, 0.0
    %v1105 = vmax.f32 %v1025, 0.0
    %v1106 = vmax.f32 %v1026, 0.0
    %v1107 = vmax.f32 %v1027, 0.0
    %v1108 = vmax.f32 %v1028, 0.0
    %v1109 = vmax.f32 %v1029, 0.0
    %v1110 = vmax.f32 %v1030, 0.0
    %v1111 = vmax.f32 %v1031, 0.0
    %v1112 = vmax.f32 %v1032, 0.0
    %v1113 = vmax.f32 %v1033, 0.0
    %v1114 = vmax.f32 %v1034, 0.0
    %v1115 = vmax.f32 %v1035, 0.0
    %v1116 = vmax.f32 %v1036, 0.0
    %v1117 = vmax.f32 %v1037, 0.0
    %v1118 = vmax.f32 %v1038, 0.0
    %v1119 = vmax.f32 %v1039, 0.0
    %v1120 = vmax.f32 %v1040, 0.0
    %v1121 = vmax.f32 %v1041, 0.0
    %v1122 = vmax.f32 %v1042, 0.0
    %v1123 = vmax.f32 %v1043, 0.0
    %v1124 = vmax.f32 %v1044, 0.0
    %v1125 = vmax.f32 %v1045, 0.0
    %v1126 = vmax.f32 %v1046, 0.0
    %v1127 = vmax.f32 %v1047, 0.0
    %v1128 = vmax.f32 %v1048, 0.0
    %v1129 = vmax.f32 %v1049, 0.0
    %v1130 = vmax.f32 %v1050, 0.0
    %v1131 = vmax.f32 %v1051, 0.0
    %v1132 = vmax.f32 %v1052, 0.0
    %v1133 = vmax.f32 %v1053, 0.0
    %v1134 = vmax.f32 %v1054, 0.0
    %v1135 = vmax.f32 %v1055, 0.0
    %v1136 = vmax.f32 %v1056, 0.0
    %v1137 = vmax.f32 %v1057, 0.0
    %v1138 = vmax.f32 %v1058, 0.0
    %v1139 = vmax.f32 %v1059, 0.0
    %v1140 = vmax.f32 %v1060, 0.0
    %v1141 = vmax.f32 %v1061, 0.0
    %v1142 = vmax.f32 %v1062, 0.0
    %v1143 = vld [vmem:[#allocation7] sm:$0xff]
    %v1144 = vld [vmem:[#allocation7 + $0x8] sm:$0xff]
    %v1145 = vld [vmem:[#allocation7 + $0x10] sm:$0xff]
    %v1146 = vld [vmem:[#allocation7 + $0x18] sm:$0xff]
    %v1147 = vld [vmem:[#allocation7 + $0x20] sm:$0xff]
    %v1148 = vld [vmem:[#allocation7 + $0x28] sm:$0xff]
    %v1149 = vld [vmem:[#allocation7 + $0x30] sm:$0xff]
    %v1150 = vld [vmem:[#allocation7 + $0x38] sm:$0xff]
    %v1151 = vld [vmem:[#allocation7 + $0x40] sm:$0xff]
    %v1152 = vld [vmem:[#allocation7 + $0x48] sm:$0xff]
    %v1163 = vlaneseq
    %v1164 = vshrl.u32 %v1163, 7
    %v1165 = vsub.s32 0, %v1164
    %v1166 = vrot.slane %v1143, %v1165
    %v1167 = vlaneseq
    %v1168 = vshrl.u32 %v1167, 7
    %v1169 = vsub.s32 1, %v1168
    %v1170 = vrot.slane %v1143, %v1169
    %v1171 = vlaneseq
    %v1172 = vshrl.u32 %v1171, 7
    %v1173 = vsub.s32 2, %v1172
    %v1174 = vrot.slane %v1143, %v1173
    %v1175 = vlaneseq
    %v1176 = vshrl.u32 %v1175, 7
    %v1177 = vsub.s32 3, %v1176
    %v1178 = vrot.slane %v1143, %v1177
    %v1179 = vlaneseq
    %v1180 = vshrl.u32 %v1179, 7
    %v1181 = vsub.s32 4, %v1180
    %v1182 = vrot.slane %v1143, %v1181
    %v1183 = vlaneseq
    %v1184 = vshrl.u32 %v1183, 7
    %v1185 = vsub.s32 5, %v1184
    %v1186 = vrot.slane %v1143, %v1185
    %v1187 = vlaneseq
    %v1188 = vshrl.u32 %v1187, 7
    %v1189 = vsub.s32 6, %v1188
    %v1190 = vrot.slane %v1143, %v1189
    %v1191 = vlaneseq
    %v1192 = vshrl.u32 %v1191, 7
    %v1193 = vsub.s32 7, %v1192
    %v1194 = vrot.slane %v1143, %v1193
    %v1195 = vlaneseq
    %v1196 = vshrl.u32 %v1195, 7
    %v1197 = vsub.s32 0, %v1196
    %v1198 = vrot.slane %v1144, %v1197
    %v1199 = vlaneseq
    %v1200 = vshrl.u32 %v1199, 7
    %v1201 = vsub.s32 1, %v1200
    %v1202 = vrot.slane %v1144, %v1201
    %v1203 = vlaneseq
    %v1204 = vshrl.u32 %v1203, 7
    %v1205 = vsub.s32 2, %v1204
    %v1206 = vrot.slane %v1144, %v1205
    %v1207 = vlaneseq
    %v1208 = vshrl.u32 %v1207, 7
    %v1209 = vsub.s32 3, %v1208
    %v1210 = vrot.slane %v1144, %v1209
    %v1211 = vlaneseq
    %v1212 = vshrl.u32 %v1211, 7
    %v1213 = vsub.s32 4, %v1212
    %v1214 = vrot.slane %v1144, %v1213
    %v1215 = vlaneseq
    %v1216 = vshrl.u32 %v1215, 7
    %v1217 = vsub.s32 5, %v1216
    %v1218 = vrot.slane %v1144, %v1217
    %v1219 = vlaneseq
    %v1220 = vshrl.u32 %v1219, 7
    %v1221 = vsub.s32 6, %v1220
    %v1222 = vrot.slane %v1144, %v1221
    %v1223 = vlaneseq
    %v1224 = vshrl.u32 %v1223, 7
    %v1225 = vsub.s32 7, %v1224
    %v1226 = vrot.slane %v1144, %v1225
    %v1227 = vlaneseq
    %v1228 = vshrl.u32 %v1227, 7
    %v1229 = vsub.s32 0, %v1228
    %v1230 = vrot.slane %v1145, %v1229
    %v1231 = vlaneseq
    %v1232 = vshrl.u32 %v1231, 7
    %v1233 = vsub.s32 1, %v1232
    %v1234 = vrot.slane %v1145, %v1233
    %v1235 = vlaneseq
    %v1236 = vshrl.u32 %v1235, 7
    %v1237 = vsub.s32 2, %v1236
    %v1238 = vrot.slane %v1145, %v1237
    %v1239 = vlaneseq
    %v1240 = vshrl.u32 %v1239, 7
    %v1241 = vsub.s32 3, %v1240
    %v1242 = vrot.slane %v1145, %v1241
    %v1243 = vlaneseq
    %v1244 = vshrl.u32 %v1243, 7
    %v1245 = vsub.s32 4, %v1244
    %v1246 = vrot.slane %v1145, %v1245
    %v1247 = vlaneseq
    %v1248 = vshrl.u32 %v1247, 7
    %v1249 = vsub.s32 5, %v1248
    %v1250 = vrot.slane %v1145, %v1249
    %v1251 = vlaneseq
    %v1252 = vshrl.u32 %v1251, 7
    %v1253 = vsub.s32 6, %v1252
    %v1254 = vrot.slane %v1145, %v1253
    %v1255 = vlaneseq
    %v1256 = vshrl.u32 %v1255, 7
    %v1257 = vsub.s32 7, %v1256
    %v1258 = vrot.slane %v1145, %v1257
    %v1259 = vlaneseq
    %v1260 = vshrl.u32 %v1259, 7
    %v1261 = vsub.s32 0, %v1260
    %v1262 = vrot.slane %v1146, %v1261
    %v1263 = vlaneseq
    %v1264 = vshrl.u32 %v1263, 7
    %v1265 = vsub.s32 1, %v1264
    %v1266 = vrot.slane %v1146, %v1265
    %v1267 = vlaneseq
    %v1268 = vshrl.u32 %v1267, 7
    %v1269 = vsub.s32 2, %v1268
    %v1270 = vrot.slane %v1146, %v1269
    %v1271 = vlaneseq
    %v1272 = vshrl.u32 %v1271, 7
    %v1273 = vsub.s32 3, %v1272
    %v1274 = vrot.slane %v1146, %v1273
    %v1275 = vlaneseq
    %v1276 = vshrl.u32 %v1275, 7
    %v1277 = vsub.s32 4, %v1276
    %v1278 = vrot.slane %v1146, %v1277
    %v1279 = vlaneseq
    %v1280 = vshrl.u32 %v1279, 7
    %v1281 = vsub.s32 5, %v1280
    %v1282 = vrot.slane %v1146, %v1281
    %v1283 = vlaneseq
    %v1284 = vshrl.u32 %v1283, 7
    %v1285 = vsub.s32 6, %v1284
    %v1286 = vrot.slane %v1146, %v1285
    %v1287 = vlaneseq
    %v1288 = vshrl.u32 %v1287, 7
    %v1289 = vsub.s32 7, %v1288
    %v1290 = vrot.slane %v1146, %v1289
    %v1291 = vlaneseq
    %v1292 = vshrl.u32 %v1291, 7
    %v1293 = vsub.s32 0, %v1292
    %v1294 = vrot.slane %v1147, %v1293
    %v1295 = vlaneseq
    %v1296 = vshrl.u32 %v1295, 7
    %v1297 = vsub.s32 1, %v1296
    %v1298 = vrot.slane %v1147, %v1297
    %v1299 = vlaneseq
    %v1300 = vshrl.u32 %v1299, 7
    %v1301 = vsub.s32 2, %v1300
    %v1302 = vrot.slane %v1147, %v1301
    %v1303 = vlaneseq
    %v1304 = vshrl.u32 %v1303, 7
    %v1305 = vsub.s32 3, %v1304
    %v1306 = vrot.slane %v1147, %v1305
    %v1307 = vlaneseq
    %v1308 = vshrl.u32 %v1307, 7
    %v1309 = vsub.s32 4, %v1308
    %v1310 = vrot.slane %v1147, %v1309
    %v1311 = vlaneseq
    %v1312 = vshrl.u32 %v1311, 7
    %v1313 = vsub.s32 5, %v1312
    %v1314 = vrot.slane %v1147, %v1313
    %v1315 = vlaneseq
    %v1316 = vshrl.u32 %v1315, 7
    %v1317 = vsub.s32 6, %v1316
    %v1318 = vrot.slane %v1147, %v1317
    %v1319 = vlaneseq
    %v1320 = vshrl.u32 %v1319, 7
    %v1321 = vsub.s32 7, %v1320
    %v1322 = vrot.slane %v1147, %v1321
    %v1323 = vlaneseq
    %v1324 = vshrl.u32 %v1323, 7
    %v1325 = vsub.s32 0, %v1324
    %v1326 = vrot.slane %v1148, %v1325
    %v1327 = vlaneseq
    %v1328 = vshrl.u32 %v1327, 7
    %v1329 = vsub.s32 1, %v1328
    %v1330 = vrot.slane %v1148, %v1329
    %v1331 = vlaneseq
    %v1332 = vshrl.u32 %v1331, 7
    %v1333 = vsub.s32 2, %v1332
    %v1334 = vrot.slane %v1148, %v1333
    %v1335 = vlaneseq
    %v1336 = vshrl.u32 %v1335, 7
    %v1337 = vsub.s32 3, %v1336
    %v1338 = vrot.slane %v1148, %v1337
    %v1339 = vlaneseq
    %v1340 = vshrl.u32 %v1339, 7
    %v1341 = vsub.s32 4, %v1340
    %v1342 = vrot.slane %v1148, %v1341
    %v1343 = vlaneseq
    %v1344 = vshrl.u32 %v1343, 7
    %v1345 = vsub.s32 5, %v1344
    %v1346 = vrot.slane %v1148, %v1345
    %v1347 = vlaneseq
    %v1348 = vshrl.u32 %v1347, 7
    %v1349 = vsub.s32 6, %v1348
    %v1350 = vrot.slane %v1148, %v1349
    %v1351 = vlaneseq
    %v1352 = vshrl.u32 %v1351, 7
    %v1353 = vsub.s32 7, %v1352
    %v1354 = vrot.slane %v1148, %v1353
    %v1355 = vlaneseq
    %v1356 = vshrl.u32 %v1355, 7
    %v1357 = vsub.s32 0, %v1356
    %v1358 = vrot.slane %v1149, %v1357
    %v1359 = vlaneseq
    %v1360 = vshrl.u32 %v1359, 7
    %v1361 = vsub.s32 1, %v1360
    %v1362 = vrot.slane %v1149, %v1361
    %v1363 = vlaneseq
    %v1364 = vshrl.u32 %v1363, 7
    %v1365 = vsub.s32 2, %v1364
    %v1366 = vrot.slane %v1149, %v1365
    %v1367 = vlaneseq
    %v1368 = vshrl.u32 %v1367, 7
    %v1369 = vsub.s32 3, %v1368
    %v1370 = vrot.slane %v1149, %v1369
    %v1371 = vlaneseq
    %v1372 = vshrl.u32 %v1371, 7
    %v1373 = vsub.s32 4, %v1372
    %v1374 = vrot.slane %v1149, %v1373
    %v1375 = vlaneseq
    %v1376 = vshrl.u32 %v1375, 7
    %v1377 = vsub.s32 5, %v1376
    %v1378 = vrot.slane %v1149, %v1377
    %v1379 = vlaneseq
    %v1380 = vshrl.u32 %v1379, 7
    %v1381 = vsub.s32 6, %v1380
    %v1382 = vrot.slane %v1149, %v1381
    %v1383 = vlaneseq
    %v1384 = vshrl.u32 %v1383, 7
    %v1385 = vsub.s32 7, %v1384
    %v1386 = vrot.slane %v1149, %v1385
    %v1387 = vlaneseq
    %v1388 = vshrl.u32 %v1387, 7
    %v1389 = vsub.s32 0, %v1388
    %v1390 = vrot.slane %v1150, %v1389
    %v1391 = vlaneseq
    %v1392 = vshrl.u32 %v1391, 7
    %v1393 = vsub.s32 1, %v1392
    %v1394 = vrot.slane %v1150, %v1393
    %v1395 = vlaneseq
    %v1396 = vshrl.u32 %v1395, 7
    %v1397 = vsub.s32 2, %v1396
    %v1398 = vrot.slane %v1150, %v1397
    %v1399 = vlaneseq
    %v1400 = vshrl.u32 %v1399, 7
    %v1401 = vsub.s32 3, %v1400
    %v1402 = vrot.slane %v1150, %v1401
    %v1403 = vlaneseq
    %v1404 = vshrl.u32 %v1403, 7
    %v1405 = vsub.s32 4, %v1404
    %v1406 = vrot.slane %v1150, %v1405
    %v1407 = vlaneseq
    %v1408 = vshrl.u32 %v1407, 7
    %v1409 = vsub.s32 5, %v1408
    %v1410 = vrot.slane %v1150, %v1409
    %v1411 = vlaneseq
    %v1412 = vshrl.u32 %v1411, 7
    %v1413 = vsub.s32 6, %v1412
    %v1414 = vrot.slane %v1150, %v1413
    %v1415 = vlaneseq
    %v1416 = vshrl.u32 %v1415, 7
    %v1417 = vsub.s32 7, %v1416
    %v1418 = vrot.slane %v1150, %v1417
    %v1419 = vlaneseq
    %v1420 = vshrl.u32 %v1419, 7
    %v1421 = vsub.s32 0, %v1420
    %v1422 = vrot.slane %v1151, %v1421
    %v1423 = vlaneseq
    %v1424 = vshrl.u32 %v1423, 7
    %v1425 = vsub.s32 1, %v1424
    %v1426 = vrot.slane %v1151, %v1425
    %v1427 = vlaneseq
    %v1428 = vshrl.u32 %v1427, 7
    %v1429 = vsub.s32 2, %v1428
    %v1430 = vrot.slane %v1151, %v1429
    %v1431 = vlaneseq
    %v1432 = vshrl.u32 %v1431, 7
    %v1433 = vsub.s32 3, %v1432
    %v1434 = vrot.slane %v1151, %v1433
    %v1435 = vlaneseq
    %v1436 = vshrl.u32 %v1435, 7
    %v1437 = vsub.s32 4, %v1436
    %v1438 = vrot.slane %v1151, %v1437
    %v1439 = vlaneseq
    %v1440 = vshrl.u32 %v1439, 7
    %v1441 = vsub.s32 5, %v1440
    %v1442 = vrot.slane %v1151, %v1441
    %v1443 = vlaneseq
    %v1444 = vshrl.u32 %v1443, 7
    %v1445 = vsub.s32 6, %v1444
    %v1446 = vrot.slane %v1151, %v1445
    %v1447 = vlaneseq
    %v1448 = vshrl.u32 %v1447, 7
    %v1449 = vsub.s32 7, %v1448
    %v1450 = vrot.slane %v1151, %v1449
    %v1451 = vlaneseq
    %v1452 = vshrl.u32 %v1451, 7
    %v1453 = vsub.s32 0, %v1452
    %v1454 = vrot.slane %v1152, %v1453
    %v1455 = vlaneseq
    %v1456 = vshrl.u32 %v1455, 7
    %v1457 = vsub.s32 1, %v1456
    %v1458 = vrot.slane %v1152, %v1457
    %v1459 = vlaneseq
    %v1460 = vshrl.u32 %v1459, 7
    %v1461 = vsub.s32 2, %v1460
    %v1462 = vrot.slane %v1152, %v1461
    %v1463 = vlaneseq
    %v1464 = vshrl.u32 %v1463, 7
    %v1465 = vsub.s32 3, %v1464
    %v1466 = vrot.slane %v1152, %v1465
    %v1467 = vlaneseq
    %v1468 = vshrl.u32 %v1467, 7
    %v1469 = vsub.s32 4, %v1468
    %v1470 = vrot.slane %v1152, %v1469
    %v1471 = vlaneseq
    %v1472 = vshrl.u32 %v1471, 7
    %v1473 = vsub.s32 5, %v1472
    %v1474 = vrot.slane %v1152, %v1473
    %v1475 = vlaneseq
    %v1476 = vshrl.u32 %v1475, 7
    %v1477 = vsub.s32 6, %v1476
    %v1478 = vrot.slane %v1152, %v1477
    %v1479 = vlaneseq
    %v1480 = vshrl.u32 %v1479, 7
    %v1481 = vsub.s32 7, %v1480
    %v1482 = vrot.slane %v1152, %v1481
    %v1563 = vmul.f32 %v1063, %v1166
    %v1564 = vmul.f32 %v1064, %v1170
    %v1565 = vmul.f32 %v1065, %v1174
    %v1566 = vmul.f32 %v1066, %v1178
    %v1567 = vmul.f32 %v1067, %v1182
    %v1568 = vmul.f32 %v1068, %v1186
    %v1569 = vmul.f32 %v1069, %v1190
    %v1570 = vmul.f32 %v1070, %v1194
    %v1571 = vmul.f32 %v1071, %v1198
    %v1572 = vmul.f32 %v1072, %v1202
    %v1573 = vmul.f32 %v1073, %v1206
    %v1574 = vmul.f32 %v1074, %v1210
    %v1575 = vmul.f32 %v1075, %v1214
    %v1576 = vmul.f32 %v1076, %v1218
    %v1577 = vmul.f32 %v1077, %v1222
    %v1578 = vmul.f32 %v1078, %v1226
    %v1579 = vmul.f32 %v1079, %v1230
    %v1580 = vmul.f32 %v1080, %v1234
    %v1581 = vmul.f32 %v1081, %v1238
    %v1582 = vmul.f32 %v1082, %v1242
    %v1583 = vmul.f32 %v1083, %v1246
    %v1584 = vmul.f32 %v1084, %v1250
    %v1585 = vmul.f32 %v1085, %v1254
    %v1586 = vmul.f32 %v1086, %v1258
    %v1587 = vmul.f32 %v1087, %v1262
    %v1588 = vmul.f32 %v1088, %v1266
    %v1589 = vmul.f32 %v1089, %v1270
    %v1590 = vmul.f32 %v1090, %v1274
    %v1591 = vmul.f32 %v1091, %v1278
    %v1592 = vmul.f32 %v1092, %v1282
    %v1593 = vmul.f32 %v1093, %v1286
    %v1594 = vmul.f32 %v1094, %v1290
    %v1595 = vmul.f32 %v1095, %v1294
    %v1596 = vmul.f32 %v1096, %v1298
    %v1597 = vmul.f32 %v1097, %v1302
    %v1598 = vmul.f32 %v1098, %v1306
    %v1599 = vmul.f32 %v1099, %v1310
    %v1600 = vmul.f32 %v1100, %v1314
    %v1601 = vmul.f32 %v1101, %v1318
    %v1602 = vmul.f32 %v1102, %v1322
    %v1603 = vmul.f32 %v1103, %v1326
    %v1604 = vmul.f32 %v1104, %v1330
    %v1605 = vmul.f32 %v1105, %v1334
    %v1606 = vmul.f32 %v1106, %v1338
    %v1607 = vmul.f32 %v1107, %v1342
    %v1608 = vmul.f32 %v1108, %v1346
    %v1609 = vmul.f32 %v1109, %v1350
    %v1610 = vmul.f32 %v1110, %v1354
    %v1611 = vmul.f32 %v1111, %v1358
    %v1612 = vmul.f32 %v1112, %v1362
    %v1613 = vmul.f32 %v1113, %v1366
    %v1614 = vmul.f32 %v1114, %v1370
    %v1615 = vmul.f32 %v1115, %v1374
    %v1616 = vmul.f32 %v1116, %v1378
    %v1617 = vmul.f32 %v1117, %v1382
    %v1618 = vmul.f32 %v1118, %v1386
    %v1619 = vmul.f32 %v1119, %v1390
    %v1620 = vmul.f32 %v1120, %v1394
    %v1621 = vmul.f32 %v1121, %v1398
    %v1622 = vmul.f32 %v1122, %v1402
    %v1623 = vmul.f32 %v1123, %v1406
    %v1624 = vmul.f32 %v1124, %v1410
    %v1625 = vmul.f32 %v1125, %v1414
    %v1626 = vmul.f32 %v1126, %v1418
    %v1627 = vmul.f32 %v1127, %v1422
    %v1628 = vmul.f32 %v1128, %v1426
    %v1629 = vmul.f32 %v1129, %v1430
    %v1630 = vmul.f32 %v1130, %v1434
    %v1631 = vmul.f32 %v1131, %v1438
    %v1632 = vmul.f32 %v1132, %v1442
    %v1633 = vmul.f32 %v1133, %v1446
    %v1634 = vmul.f32 %v1134, %v1450
    %v1635 = vmul.f32 %v1135, %v1454
    %v1636 = vmul.f32 %v1136, %v1458
    %v1637 = vmul.f32 %v1137, %v1462
    %v1638 = vmul.f32 %v1138, %v1466
    %v1639 = vmul.f32 %v1139, %v1470
    %v1640 = vmul.f32 %v1140, %v1474
    %v1641 = vmul.f32 %v1141, %v1478
    %v1642 = vmul.f32 %v1142, %v1482
    %v1643 = vadd.f32 %v1563, %v1564
    %v1644 = vadd.f32 %v1643, %v1565
    %v1645 = vadd.f32 %v1644, %v1566
    %v1646 = vadd.f32 %v1645, %v1567
    %v1647 = vadd.f32 %v1646, %v1568
    %v1648 = vadd.f32 %v1647, %v1569
    %v1649 = vadd.f32 %v1648, %v1570
    %v1650 = vadd.f32 %v1649, %v1571
    %v1651 = vadd.f32 %v1650, %v1572
    %v1652 = vadd.f32 %v1651, %v1573
    %v1653 = vadd.f32 %v1652, %v1574
    %v1654 = vadd.f32 %v1653, %v1575
    %v1655 = vadd.f32 %v1654, %v1576
    %v1656 = vadd.f32 %v1655, %v1577
    %v1657 = vadd.f32 %v1656, %v1578
    %v1658 = vadd.f32 %v1657, %v1579
    %v1659 = vadd.f32 %v1658, %v1580
    %v1660 = vadd.f32 %v1659, %v1581
    %v1661 = vadd.f32 %v1660, %v1582
    %v1662 = vadd.f32 %v1661, %v1583
    %v1663 = vadd.f32 %v1662, %v1584
    %v1664 = vadd.f32 %v1663, %v1585
    %v1665 = vadd.f32 %v1664, %v1586
    %v1666 = vadd.f32 %v1665, %v1587
    %v1667 = vadd.f32 %v1666, %v1588
    %v1668 = vadd.f32 %v1667, %v1589
    %v1669 = vadd.f32 %v1668, %v1590
    %v1670 = vadd.f32 %v1669, %v1591
    %v1671 = vadd.f32 %v1670, %v1592
    %v1672 = vadd.f32 %v1671, %v1593
    %v1673 = vadd.f32 %v1672, %v1594
    %v1674 = vadd.f32 %v1673, %v1595
    %v1675 = vadd.f32 %v1674, %v1596
    %v1676 = vadd.f32 %v1675, %v1597
    %v1677 = vadd.f32 %v1676, %v1598
    %v1678 = vadd.f32 %v1677, %v1599
    %v1679 = vadd.f32 %v1678, %v1600
    %v1680 = vadd.f32 %v1679, %v1601
    %v1681 = vadd.f32 %v1680, %v1602
    %v1682 = vadd.f32 %v1681, %v1603
    %v1683 = vadd.f32 %v1682, %v1604
    %v1684 = vadd.f32 %v1683, %v1605
    %v1685 = vadd.f32 %v1684, %v1606
    %v1686 = vadd.f32 %v1685, %v1607
    %v1687 = vadd.f32 %v1686, %v1608
    %v1688 = vadd.f32 %v1687, %v1609
    %v1689 = vadd.f32 %v1688, %v1610
    %v1690 = vadd.f32 %v1689, %v1611
    %v1691 = vadd.f32 %v1690, %v1612
    %v1692 = vadd.f32 %v1691, %v1613
    %v1693 = vadd.f32 %v1692, %v1614
    %v1694 = vadd.f32 %v1693, %v1615
    %v1695 = vadd.f32 %v1694, %v1616
    %v1696 = vadd.f32 %v1695, %v1617
    %v1697 = vadd.f32 %v1696, %v1618
    %v1698 = vadd.f32 %v1697, %v1619
    %v1699 = vadd.f32 %v1698, %v1620
    %v1700 = vadd.f32 %v1699, %v1621
    %v1701 = vadd.f32 %v1700, %v1622
    %v1702 = vadd.f32 %v1701, %v1623
    %v1703 = vadd.f32 %v1702, %v1624
    %v1704 = vadd.f32 %v1703, %v1625
    %v1705 = vadd.f32 %v1704, %v1626
    %v1706 = vadd.f32 %v1705, %v1627
    %v1707 = vadd.f32 %v1706, %v1628
    %v1708 = vadd.f32 %v1707, %v1629
    %v1709 = vadd.f32 %v1708, %v1630
    %v1710 = vadd.f32 %v1709, %v1631
    %v1711 = vadd.f32 %v1710, %v1632
    %v1712 = vadd.f32 %v1711, %v1633
    %v1713 = vadd.f32 %v1712, %v1634
    %v1714 = vadd.f32 %v1713, %v1635
    %v1715 = vadd.f32 %v1714, %v1636
    %v1716 = vadd.f32 %v1715, %v1637
    %v1717 = vadd.f32 %v1716, %v1638
    %v1718 = vadd.f32 %v1717, %v1639
    %v1719 = vadd.f32 %v1718, %v1640
    %v1720 = vadd.f32 %v1719, %v1641
    %v1721 = vadd.f32 %v1720, %v1642
    %1722 = vadd.xlane.f32.xlu0 %v1721
    %v1723 = vpop.xlane.xlu0 %1722
    %v1724 = vld [vmem:[#allocation2] sm:$0x1]
    %v1726 = vlaneseq
    %v1727 = vshrl.u32 %v1726, 7
    %v1728 = vsub.s32 0, %v1727
    %v1729 = vrot.slane %v1724, %v1728
    %v1731 = vadd.f32 %v1723, %v1729
    %vm1732 = vcmask 7168
    %1733 = vst.msk [vmem:[%s5] sm:$0xff] %vm1732, %v1731
    // Predicated region
    $region34: #{simple_nn_forward.1} parent=1 // pred_check
      _
    $region35: #{simple_nn_forward.1} parent=1 // pred_check_branch
      %1735 = sbr.rel (0) target = $region37
    $region36: #{simple_nn_forward.1} parent=1 // pred_region
      _
    $region37: #{simple_nn_forward.1} parent=1 // pred_fallthru
      _
    // Predicated region
    $region38: #{simple_nn_forward.1} parent=1 // pred_check
      _
    $region39: #{simple_nn_forward.1} parent=1 // pred_check_branch
      %1737 = sbr.rel (0) target = $region41
    $region40: #{simple_nn_forward.1} parent=1 // pred_region
      _
    $region41: #{simple_nn_forward.1} parent=1 // pred_fallthru
      _
    %1738 = vsyncpa [#allocation4], 1
    %1739 = vsyncpa [#allocation6], 1

</llo_original>
